<compile_context>
chip_gen: v7x
topology: tpu7x:2x2x1
jax: 0.10.0
libtpu: 0.0.40
codegen_flags: <defaults>
</compile_context>

<pallas_src>
import functools

import jax
import jax.numpy as jnp
from jax.experimental import pallas as pl
from jax.experimental.pallas import tpu as pltpu


def _layernorm_kernel(x_ref, gamma_ref, beta_ref, o_ref, *, eps):
    # x_ref: (row_tile, D); gamma_ref / beta_ref: (1, D)
    x = x_ref[...].astype(jnp.float32)
    mean = jnp.mean(x, axis=-1, keepdims=True)
    var = jnp.mean(jnp.square(x - mean), axis=-1, keepdims=True)
    inv_std = jax.lax.rsqrt(var + eps)                    # EUP slot
    g = gamma_ref[...].astype(jnp.float32)
    b = beta_ref[...].astype(jnp.float32)
    scale = g * inv_std                                   # (row_tile, D) via broadcast
    shift = b - mean * scale
    o_ref[...] = (x * scale + shift).astype(o_ref.dtype)  # single FMA per element


def _round_up(n, m):
    return ((n + m - 1) // m) * m


def _vmem_capacity_bytes():
    # Physical VMEM per TensorCore; fall back to the most conservative (v7x: 64 MiB).
    try:
        return int(pltpu.get_tpu_info().vmem_capacity_bytes)
    except Exception:
        return 64 * 1024 * 1024


def _pick_row_tile(rows, d, in_itemsize, out_itemsize, vmem_bytes):
    # Double-buffered input block + double-buffered output block must fit the budget.
    # Keep the footprint well under physical VMEM (~45%), leave room for gamma/beta
    # and compiler scratch.
    budget = int(vmem_bytes * 0.45)
    per_row = 2 * d * in_itemsize + 2 * d * out_itemsize
    rt = budget // max(per_row, 1)
    rt = max(8, min(int(rt), 1024))
    rt = (rt // 8) * 8                         # sublane multiple
    rt = min(rt, _round_up(rows, 8))           # no point tiling larger than the input
    return max(rt, 8)


def layer_normalization(x, gamma, beta, eps=1e-5, row_tile=None):
    """x: (B, S, D); gamma, beta: (D,). Normalizes over the last dim."""
    B, S, D = x.shape
    rows = B * S
    x2 = x.reshape(rows, D)
    gamma2 = gamma.reshape(1, D)
    beta2 = beta.reshape(1, D)

    in_itemsize = jnp.dtype(x.dtype).itemsize
    out_itemsize = in_itemsize
    vmem_bytes = _vmem_capacity_bytes()

    if row_tile is None:
        row_tile = _pick_row_tile(rows, D, in_itemsize, out_itemsize, vmem_bytes)

    # Pad rows to a multiple of row_tile (padded zero rows normalize to finite values).
    rows_p = _round_up(rows, row_tile)
    if rows_p != rows:
        x2 = jnp.pad(x2, ((0, rows_p - rows), (0, 0)))

    # VMEM limit: double-buffered in/out blocks + gamma/beta + margin, capped below physical.
    block_bytes = row_tile * D * (in_itemsize + out_itemsize)
    param_bytes = 2 * 2 * D * jnp.dtype(gamma.dtype).itemsize
    vmem_limit = min(max(2 * block_bytes + param_bytes + (4 << 20), 16 << 20),
                     int(vmem_bytes * 0.9))

    kernel = functools.partial(_layernorm_kernel, eps=eps)

    out2 = pl.pallas_call(
        kernel,
        out_shape=jax.ShapeDtypeStruct((rows_p, D), x.dtype),
        grid_spec=pl.GridSpec(
            grid=(rows_p // row_tile,),
            in_specs=[
                pl.BlockSpec((row_tile, D), lambda i: (i, 0)),  # x rows
                pl.BlockSpec((1, D), lambda i: (0, 0)),         # gamma (resident)
                pl.BlockSpec((1, D), lambda i: (0, 0)),         # beta  (resident)
            ],
            out_specs=pl.BlockSpec((row_tile, D), lambda i: (i, 0)),
        ),
        compiler_params=pltpu.CompilerParams(
            dimension_semantics=("parallel",),
            vmem_limit_bytes=int(vmem_limit),
        ),
    )(x2, gamma2, beta2)

    if rows_p != rows:
        out2 = out2[:rows]
    return out2.reshape(B, S, D)


def layer_normalization_ref(x, gamma, beta, eps=1e-5):
    mean = jnp.mean(x, axis=-1, keepdims=True)
    var = jnp.mean((x - mean) ** 2, axis=-1, keepdims=True)
    std = jnp.sqrt(var + eps)
    y = (x - mean) / std
    return gamma * y + beta


if __name__ == "__main__":
    # Small shapes consistent with the module's (batch, seq, d_model) convention.
    # d_model=512 matches the spec and keeps the output lane-dense (multiple of 128).
    batch, seq, d_model = 2, 8, 512
    key = jax.random.PRNGKey(0)
    kx, kg, kb = jax.random.split(key, 3)
    x = jax.random.normal(kx, (batch, seq, d_model), dtype=jnp.float32)

    # The module initializes gamma=ones, beta=zeros; use random values here to
    # exercise the fused-affine path (they are learnable parameters either way).
    gamma = jax.random.normal(kg, (d_model,), dtype=jnp.float32)
    beta = jax.random.normal(kb, (d_model,), dtype=jnp.float32)

    out = layer_normalization(x, gamma, beta)
    out = jax.block_until_ready(out)

    ref = layer_normalization_ref(x, gamma, beta)
    assert out.shape == (batch, seq, d_model)
    assert jnp.allclose(out, ref, atol=1e-5, rtol=1e-5)

    # Also check the default-initialized (ones/zeros) parameters as in the module.
    out2 = jax.block_until_ready(
        layer_normalization(x, jnp.ones((d_model,)), jnp.zeros((d_model,))))
    ref2 = layer_normalization_ref(x, jnp.ones((d_model,)), jnp.zeros((d_model,)))
    assert jnp.allclose(out2, ref2, atol=1e-5, rtol=1e-5)

    print("KERNEL_OK")
</pallas_src>

<mosaic_0001>
module attributes {stable_mosaic.version = 11 : i64} {
  func.func @_layernorm_kernel(%arg0: i32, %arg1: memref<16x512xf32, #tpu.memory_space<vmem>>, %arg2: memref<1x512xf32, #tpu.memory_space<vmem>>, %arg3: memref<1x512xf32, #tpu.memory_space<vmem>>, %arg4: memref<16x512xf32, #tpu.memory_space<vmem>>) attributes {dimension_semantics = [#tpu.dimension_semantics<parallel>], iteration_bounds = array<i64: 1>, scalar_prefetch = 0 : i64, scratch_operands = 0 : i64, tpu.core_type = #tpu.core_type<tc>, window_params = [{transform_indices = @transform_0, window_bounds = array<i64: 16, 512>}, {pipeline_mode = #tpu.pipeline_mode<synchronous>, transform_indices = @transform_1, window_bounds = array<i64: 1, 512>}, {pipeline_mode = #tpu.pipeline_mode<synchronous>, transform_indices = @transform_2, window_bounds = array<i64: 1, 512>}, {transform_indices = @transform_3, window_bounds = array<i64: 16, 512>}]} {
    %c0 = arith.constant 0 : index
    %c0_0 = arith.constant 0 : index
    %0 = vector.load %arg1[%c0, %c0_0] : memref<16x512xf32, #tpu.memory_space<vmem>>, vector<16x512xf32>
    %cst = arith.constant dense<0.000000e+00> : vector<16xf32>
    %1 = vector.multi_reduction <add>, %0, %cst [1] : vector<16x512xf32> to vector<16xf32>
    %2 = vector.shape_cast %1 : vector<16xf32> to vector<16x1xf32>
    %cst_1 = arith.constant 5.120000e+02 : f32
    %3 = vector.broadcast %cst_1 : f32 to vector<16x1xf32>
    %4 = arith.divf %2, %3 : vector<16x1xf32>
    %5 = vector.broadcast %4 : vector<16x1xf32> to vector<16x512xf32>
    %6 = arith.subf %0, %5 : vector<16x512xf32>
    %7 = arith.mulf %6, %6 : vector<16x512xf32>
    %cst_2 = arith.constant dense<0.000000e+00> : vector<16xf32>
    %8 = vector.multi_reduction <add>, %7, %cst_2 [1] : vector<16x512xf32> to vector<16xf32>
    %9 = vector.shape_cast %8 : vector<16xf32> to vector<16x1xf32>
    %cst_3 = arith.constant 5.120000e+02 : f32
    %10 = vector.broadcast %cst_3 : f32 to vector<16x1xf32>
    %11 = arith.divf %9, %10 : vector<16x1xf32>
    %cst_4 = arith.constant 9.99999974E-6 : f32
    %12 = vector.broadcast %cst_4 : f32 to vector<16x1xf32>
    %13 = arith.addf %11, %12 : vector<16x1xf32>
    %14 = math.rsqrt %13 : vector<16x1xf32>
    %c0_5 = arith.constant 0 : index
    %c0_6 = arith.constant 0 : index
    %15 = vector.load %arg2[%c0_5, %c0_6] : memref<1x512xf32, #tpu.memory_space<vmem>>, vector<1x512xf32>
    %c0_7 = arith.constant 0 : index
    %c0_8 = arith.constant 0 : index
    %16 = vector.load %arg3[%c0_7, %c0_8] : memref<1x512xf32, #tpu.memory_space<vmem>>, vector<1x512xf32>
    %17 = vector.broadcast %15 : vector<1x512xf32> to vector<16x512xf32>
    %18 = vector.broadcast %14 : vector<16x1xf32> to vector<16x512xf32>
    %19 = arith.mulf %17, %18 : vector<16x512xf32>
    %20 = vector.broadcast %4 : vector<16x1xf32> to vector<16x512xf32>
    %21 = arith.mulf %20, %19 : vector<16x512xf32>
    %22 = vector.broadcast %16 : vector<1x512xf32> to vector<16x512xf32>
    %23 = arith.subf %22, %21 : vector<16x512xf32>
    %24 = arith.mulf %0, %19 : vector<16x512xf32>
    %25 = arith.addf %24, %23 : vector<16x512xf32>
    %c0_9 = arith.constant 0 : index
    %c0_10 = arith.constant 0 : index
    %26 = vector.load %arg4[%c0_9, %c0_10] : memref<16x512xf32, #tpu.memory_space<vmem>>, vector<16x512xf32>
    tpu.vector_store %arg4[%c0_9, %c0_10], %25 {strides = array<i32>} : memref<16x512xf32, #tpu.memory_space<vmem>>, vector<16x512xf32>,
    return
  }
  func.func @transform_0(%arg0: i32) -> (i32, i32) {
    %c0_i32 = arith.constant 0 : i32
    %c0_i32_0 = arith.constant 0 : i32
    return %arg0, %c0_i32 : i32, i32
  }
  func.func @transform_1(%arg0: i32) -> (i32, i32) {
    %c0_i32 = arith.constant 0 : i32
    %c0_i32_0 = arith.constant 0 : i32
    %c0_i32_1 = arith.constant 0 : i32
    return %c0_i32, %c0_i32_0 : i32, i32
  }
  func.func @transform_2(%arg0: i32) -> (i32, i32) {
    %c0_i32 = arith.constant 0 : i32
    %c0_i32_0 = arith.constant 0 : i32
    %c0_i32_1 = arith.constant 0 : i32
    return %c0_i32, %c0_i32_0 : i32, i32
  }
  func.func @transform_3(%arg0: i32) -> (i32, i32) {
    %c0_i32 = arith.constant 0 : i32
    %c0_i32_0 = arith.constant 0 : i32
    return %arg0, %c0_i32 : i32, i32
  }
}

</mosaic_0001>

<llo_original>
// kernel: tpu_custom_call.1
$region0: #{tpu_custom_call.1}
  #allocation0 [shape = 'u32[]', space=smem, size = 0x4, offset = 0x4, fixed_abs, tag = 'smem constant byte address 0x4 - core index']
  #allocation1 [shape = 'u32[144,128]{1,0:T(1,128)}', space=vmem, size = 0x12000, scoped, tag = 'internal scratch']
  %s0 = inlined_call_operand.hbm [shape: f32[16,512], index: 0, kind: input, shape index: {}]
  %s1 = inlined_call_operand.hbm [shape: f32[1,512], index: 1, kind: input, shape index: {}]
  %s2 = inlined_call_operand.vmem [shape: f32[1,512], index: 2, kind: input, shape index: {}]
  %s3 = inlined_call_operand.hbm [shape: f32[16,512], index: 3, kind: output, shape index: {}]
  %s4 = sld [smem:[#allocation0]]
  $region30: #{tpu_custom_call.1} parent=0
    _
  %s6 = ssub.s32 1, %s4
  %s7 = scalar_select 0, %s6, %s4
  $region1: #{tpu_custom_call.1} parent=0
    #allocation2 [shape = 'u8[32768]{0}', space=vmem, size = 0x8000, scoped, tag = 'input window, operand 0, single buffered']
    #allocation3 [shape = 's32[1]{0}', space=sflag, size = 0x4, scoped, tag = 'scoped memory for tpu_custom_call.1']
    #allocation4 [shape = 's32[1]{0}', space=sflag, size = 0x4, scoped, tag = 'scoped memory for tpu_custom_call.1']
    #allocation5 [shape = 'u8[2048]{0}', space=vmem, size = 0x800, scoped, tag = 'input window, operand 1, single buffered']
    #allocation6 [shape = 's32[1]{0}', space=sflag, size = 0x4, scoped, tag = 'scoped memory for tpu_custom_call.1']
    #allocation7 [shape = 'u8[32768]{0}', space=vmem, size = 0x8000, scoped, tag = 'output window, operand 0, single buffered']
    %8 = vsyncpa [#allocation3], 0
    %9 = vsyncpa [#allocation6], 0
    %10 = vsyncpa [#allocation4], 0
    // Predicated region
    $region2: #{tpu_custom_call.1} parent=1 // pred_check
      _
    $region3: #{tpu_custom_call.1} parent=1 // pred_check_branch
      %12 = sbr.rel (0) target = $region5
    $region4: #{tpu_custom_call.1} parent=1 // pred_region
      %s14 = ssub.s32 1024, 1024
      %15 = vsyncadd [#allocation3], %s14
      %s16 = sshll.u32 [#allocation2], 4
      %s17 = int_to_ptr.vmem [resolvable:$true] %s16
      %22 = dma.hbm_to_vmem [thread:$0]  %s0, 1024, %s17, [#allocation3], 512, 512, 32
    $region5: #{tpu_custom_call.1} parent=1 // pred_fallthru
      _
    // Predicated region
    $region6: #{tpu_custom_call.1} parent=1 // pred_check
      _
    $region7: #{tpu_custom_call.1} parent=1 // pred_check_branch
      %24 = sbr.rel (0) target = $region9
    $region8: #{tpu_custom_call.1} parent=1 // pred_region
      %s26 = ssub.s32 64, 64
      %27 = vsyncadd [#allocation6], %s26
      %s29 = sshll.u32 [#allocation5], 4
      %s30 = int_to_ptr.vmem [resolvable:$true] %s29
      %32 = dma.hbm_to_vmem [thread:$0]  %s1, 64, %s30, [#allocation6]
    $region9: #{tpu_custom_call.1} parent=1 // pred_fallthru
      _
    // Predicated region
    $region10: #{tpu_custom_call.1} parent=1 // pred_check
      _
    $region11: #{tpu_custom_call.1} parent=1 // pred_check_branch
      %34 = sbr.rel (0) target = $region13
    $region12: #{tpu_custom_call.1} parent=1 // pred_region
      _
    $region13: #{tpu_custom_call.1} parent=1 // pred_fallthru
      _
    // Predicated region
    $region14: #{tpu_custom_call.1} parent=1 // pred_check
      _
    $region15: #{tpu_custom_call.1} parent=1 // pred_check_branch
      %36 = sbr.rel (0) target = $region17
    $region16: #{tpu_custom_call.1} parent=1 // pred_region
      %37 = dma.done [#allocation3], 1024
    $region17: #{tpu_custom_call.1} parent=1 // pred_fallthru
      _
    // Predicated region
    $region18: #{tpu_custom_call.1} parent=1 // pred_check
      _
    $region19: #{tpu_custom_call.1} parent=1 // pred_check_branch
      %39 = sbr.rel (0) target = $region21
    $region20: #{tpu_custom_call.1} parent=1 // pred_region
      %40 = dma.done [#allocation6], 64
    $region21: #{tpu_custom_call.1} parent=1 // pred_fallthru
      _
    %v41 = vld [vmem:[#allocation2] sm:$0xff]
    %v42 = vld [vmem:[#allocation2 + $0x8] sm:$0xff]
    %v43 = vld [vmem:[#allocation2 + $0x10] sm:$0xff]
    %v44 = vld [vmem:[#allocation2 + $0x18] sm:$0xff]
    %v45 = vld [vmem:[#allocation2 + $0x20] sm:$0xff]
    %v46 = vld [vmem:[#allocation2 + $0x28] sm:$0xff]
    %v47 = vld [vmem:[#allocation2 + $0x30] sm:$0xff]
    %v48 = vld [vmem:[#allocation2 + $0x38] sm:$0xff]
    %v49 = vadd.f32 %v41, %v42
    %v50 = vadd.f32 %v49, %v43
    %v51 = vadd.f32 %v50, %v44
    %52 = vadd.xlane.f32.xlu0 %v51
    %v53 = vpop.xlane.xlu0 %52
    %v54 = vadd.f32 %v45, %v46
    %v55 = vadd.f32 %v54, %v47
    %v56 = vadd.f32 %v55, %v48
    %57 = vadd.xlane.f32.xlu0 %v56
    %v58 = vpop.xlane.xlu0 %57
    %v59 = vrcp.pop 512.0
    %v60 = vmul.f32 %v53, %v59
    %v61 = vmul.f32 %v58, %v59
    %v62 = vsub.f32 %v41, %v60
    %v63 = vsub.f32 %v42, %v60
    %v64 = vsub.f32 %v43, %v60
    %v65 = vsub.f32 %v44, %v60
    %v66 = vsub.f32 %v45, %v61
    %v67 = vsub.f32 %v46, %v61
    %v68 = vsub.f32 %v47, %v61
    %v69 = vsub.f32 %v48, %v61
    %v70 = vmul.f32 %v62, %v62
    %v71 = vmul.f32 %v63, %v63
    %v72 = vmul.f32 %v64, %v64
    %v73 = vmul.f32 %v65, %v65
    %v74 = vmul.f32 %v66, %v66
    %v75 = vmul.f32 %v67, %v67
    %v76 = vmul.f32 %v68, %v68
    %v77 = vmul.f32 %v69, %v69
    %v78 = vadd.f32 %v70, %v71
    %v79 = vadd.f32 %v78, %v72
    %v80 = vadd.f32 %v79, %v73
    %81 = vadd.xlane.f32.xlu0 %v80
    %v82 = vpop.xlane.xlu0 %81
    %v83 = vadd.f32 %v74, %v75
    %v84 = vadd.f32 %v83, %v76
    %v85 = vadd.f32 %v84, %v77
    %86 = vadd.xlane.f32.xlu0 %v85
    %v87 = vpop.xlane.xlu0 %86
    %v88 = vmul.f32 %v82, %v59
    %v89 = vmul.f32 %v87, %v59
    %v90 = vadd.f32 %v88, 1e-05
    %v91 = vadd.f32 %v89, 1e-05
    %v92 = vrsqrt.pop %v90
    %v93 = vrsqrt.pop %v91
    %v94 = vld [vmem:[#allocation5] sm:$0xf]
    %v95 = vld [vmem:[%s2] sm:$0xf]
    %v97 = vlaneseq
    %v98 = vshrl.u32 %v97, 7
    %v99 = vsub.s32 0, %v98
    %v100 = vrot.slane %v94, %v99
    %v101 = vlaneseq
    %v102 = vshrl.u32 %v101, 7
    %v103 = vsub.s32 1, %v102
    %v104 = vrot.slane %v94, %v103
    %v105 = vlaneseq
    %v106 = vshrl.u32 %v105, 7
    %v107 = vsub.s32 2, %v106
    %v108 = vrot.slane %v94, %v107
    %v109 = vlaneseq
    %v110 = vshrl.u32 %v109, 7
    %v111 = vsub.s32 3, %v110
    %v112 = vrot.slane %v94, %v111
    %v117 = vmul.f32 %v100, %v92
    %v118 = vmul.f32 %v104, %v92
    %v119 = vmul.f32 %v108, %v92
    %v120 = vmul.f32 %v112, %v92
    %v121 = vmul.f32 %v100, %v93
    %v122 = vmul.f32 %v104, %v93
    %v123 = vmul.f32 %v108, %v93
    %v124 = vmul.f32 %v112, %v93
    %v125 = vmul.f32 %v60, %v117
    %v126 = vmul.f32 %v60, %v118
    %v127 = vmul.f32 %v60, %v119
    %v128 = vmul.f32 %v60, %v120
    %v129 = vmul.f32 %v61, %v121
    %v130 = vmul.f32 %v61, %v122
    %v131 = vmul.f32 %v61, %v123
    %v132 = vmul.f32 %v61, %v124
    %v134 = vlaneseq
    %v135 = vshrl.u32 %v134, 7
    %v136 = vsub.s32 0, %v135
    %v137 = vrot.slane %v95, %v136
    %v138 = vlaneseq
    %v139 = vshrl.u32 %v138, 7
    %v140 = vsub.s32 1, %v139
    %v141 = vrot.slane %v95, %v140
    %v142 = vlaneseq
    %v143 = vshrl.u32 %v142, 7
    %v144 = vsub.s32 2, %v143
    %v145 = vrot.slane %v95, %v144
    %v146 = vlaneseq
    %v147 = vshrl.u32 %v146, 7
    %v148 = vsub.s32 3, %v147
    %v149 = vrot.slane %v95, %v148
    %v154 = vsub.f32 %v137, %v125
    %v155 = vsub.f32 %v141, %v126
    %v156 = vsub.f32 %v145, %v127
    %v157 = vsub.f32 %v149, %v128
    %v158 = vsub.f32 %v137, %v129
    %v159 = vsub.f32 %v141, %v130
    %v160 = vsub.f32 %v145, %v131
    %v161 = vsub.f32 %v149, %v132
    %v162 = vmul.f32 %v41, %v117
    %v163 = vmul.f32 %v42, %v118
    %v164 = vmul.f32 %v43, %v119
    %v165 = vmul.f32 %v44, %v120
    %v166 = vmul.f32 %v45, %v121
    %v167 = vmul.f32 %v46, %v122
    %v168 = vmul.f32 %v47, %v123
    %v169 = vmul.f32 %v48, %v124
    %v170 = vadd.f32 %v162, %v154
    %v171 = vadd.f32 %v163, %v155
    %v172 = vadd.f32 %v164, %v156
    %v173 = vadd.f32 %v165, %v157
    %v174 = vadd.f32 %v166, %v158
    %v175 = vadd.f32 %v167, %v159
    %v176 = vadd.f32 %v168, %v160
    %v177 = vadd.f32 %v169, %v161
    %178 = vst [vmem:[#allocation7] sm:$0xff] %v170
    %179 = vst [vmem:[#allocation7 + $0x8] sm:$0xff] %v171
    %180 = vst [vmem:[#allocation7 + $0x10] sm:$0xff] %v172
    %181 = vst [vmem:[#allocation7 + $0x18] sm:$0xff] %v173
    %182 = vst [vmem:[#allocation7 + $0x20] sm:$0xff] %v174
    %183 = vst [vmem:[#allocation7 + $0x28] sm:$0xff] %v175
    %184 = vst [vmem:[#allocation7 + $0x30] sm:$0xff] %v176
    %185 = vst [vmem:[#allocation7 + $0x38] sm:$0xff] %v177
    // Predicated region
    $region22: #{tpu_custom_call.1} parent=1 // pred_check
      _
    $region23: #{tpu_custom_call.1} parent=1 // pred_check_branch
      %187 = sbr.rel (0) target = $region25
    $region24: #{tpu_custom_call.1} parent=1 // pred_region
      %s189 = ssub.s32 1024, 1024
      %190 = vsyncadd [#allocation4], %s189
      %s191 = sshll.u32 [#allocation7], 4
      %s192 = int_to_ptr.vmem [resolvable:$true] %s191
      %197 = dma.vmem_to_hbm [thread:$0]  %s192, 1024, %s3, [#allocation4], 512, 512, 32
    $region25: #{tpu_custom_call.1} parent=1 // pred_fallthru
      _
    // Predicated region
    $region26: #{tpu_custom_call.1} parent=1 // pred_check
      _
    $region27: #{tpu_custom_call.1} parent=1 // pred_check_branch
      %199 = sbr.rel (0) target = $region29
    $region28: #{tpu_custom_call.1} parent=1 // pred_region
      %200 = dma.done [#allocation4], 1024
    $region29: #{tpu_custom_call.1} parent=1 // pred_fallthru
      _
    %201 = vsyncpa [#allocation3], 1
    %202 = vsyncpa [#allocation6], 1
    %203 = vsyncpa [#allocation4], 1

</llo_original>
